<compile_context>
chip_gen: v5e
topology: v5e:2x2
jax: 0.10.0
libtpu: 0.0.40
codegen_flags: <defaults>
</compile_context>

<pallas_src>
import functools

import jax
import jax.numpy as jnp
import numpy as np
from jax import lax
from jax.experimental import pallas as pl
from jax.experimental.pallas import tpu as pltpu

_GATE_ORDER = (0, 1, 3, 2)  # PyTorch (i, f, g, o) -> kernel (i, f, o, g)


def prepare_encoder_params(raw):
    """One-time fusion of raw weights into the kernel layout (call once)."""
    emb = raw["embedding"].astype(jnp.float32)                 # (V, H)
    V, H = emb.shape

    def gate_reorder(w, lead):
        # (lead, 4H) in PyTorch gate order -> (lead, 4, H) in kernel order.
        return w.astype(jnp.float32).reshape(lead, 4, H)[:, _GATE_ORDER, :]

    wih = [gate_reorder(raw["w_ih"][d], H) for d in (0, 1)]    # (H, 4, H)
    whh = [gate_reorder(raw["w_hh"][d], H) for d in (0, 1)]    # (H, 4, H)
    b = [gate_reorder(raw["b"][d], 1) for d in (0, 1)]         # (1, 4, H)

    # Embedding folded through the input-to-hidden weights: one (V, 4H) table
    # per direction, placed into direction-minor column blocks of a combined
    # (2V+1, 8H) matrix whose last row is the merged bias (selected by a
    # constant one-hot lane).  The kernel's single one-hot GEMM then produces
    # bias-included, direction-correct gate pre-activations.
    hp = jax.lax.Precision.HIGHEST
    eg = [jnp.dot(emb, wih[d].reshape(H, 4 * H), precision=hp).reshape(V, 4, H)
          for d in (0, 1)]
    zv = jnp.zeros((V, 4, H), jnp.float32)
    rows_f = jnp.stack([eg[0], zv], axis=2).reshape(V, 8 * H)
    rows_b = jnp.stack([zv, eg[1]], axis=2).reshape(V, 8 * H)
    b_row = jnp.stack(b, axis=2).reshape(1, 8 * H)
    w_emb_gates = jnp.concatenate([rows_f, rows_b, b_row], axis=0)  # (2V+1,8H)

    # Block-diagonal recurrent weight (2H, 8H), same column layout.
    zh = jnp.zeros((H, 4, H), jnp.float32)
    whh_fused = jnp.concatenate(
        [jnp.stack([whh[0], zh], axis=2), jnp.stack([zh, whh[1]], axis=2)],
        axis=0).reshape(2 * H, 8 * H)

    return {
        "w_emb_gates": w_emb_gates,                    # (2V+1, 8H)
        "w_hh": whh_fused,                             # (2H, 8H)
        "w_out": raw["w_out"].astype(jnp.float32),     # (2H, H)
        "b_out": raw["b_out"].astype(jnp.float32),     # (1, H)
        "vocab": V,
        "hidden": H,
    }


def _bilstm_encoder_kernel(ids_f_ref, ids_b_ref, h0_ref, c0_ref,
                           wemb_ref, whh_ref, wout_ref, bout_ref,
                           out_ref, gx_ref):
    """Fused embedding + bidirectional LSTM + Linear + ReLU, all in VMEM."""
    TB = ids_f_ref.shape[0]
    K = wemb_ref.shape[0]                  # 2*vocab + 1 (last row = bias)
    V = (K - 1) // 2
    _, B, H = h0_ref.shape                 # (2, B, H)
    T = TB // B
    H2 = 2 * H                             # fused state width [fwd | bwd]

    # (1) Embedding gather + input GEMM + bias + fwd/bwd time reversal as ONE
    #     one-hot MXU matmul.  Row t*B+b of the one-hot encodes
    #     [x_ids[b,t] | x_ids[b,T-1-t] | 1]; the combined table routes the fwd
    #     id to fwd gate columns, the bwd id to bwd columns and the constant
    #     lane to the merged bias, so gx needs no per-step select.
    lane = lax.broadcasted_iota(jnp.int32, (TB, K), 1)
    one_hot = jnp.where((lane == ids_f_ref[...])
                        | (lane == ids_b_ref[...] + V)
                        | (lane == 2 * V), 1.0, 0.0)
    gx_ref[...] = jnp.dot(one_hot, wemb_ref[...],
                          preferred_element_type=jnp.float32)

    # (2) Fused fwd+bwd recurrence, fully unrolled (T static & small).
    #     Gate columns are [i | f | o | g] (each 2H wide, [fwd|bwd]): sigmoid
    #     covers one contiguous 3*2H slice, tanh only the g slice.
    h = jnp.concatenate([h0_ref[0], h0_ref[1]], axis=1)   # (B, 2H)
    c = jnp.concatenate([c0_ref[0], c0_ref[1]], axis=1)   # (B, 2H)
    for t in range(T):
        # whh_ref is indexed inside the dot (not hoisted into a value) to keep
        # vreg pressure low across the unrolled body.
        gates = (jnp.dot(h, whh_ref[...], preferred_element_type=jnp.float32)
                 + gx_ref[pl.ds(t * B, B), :])
        sig = jax.nn.sigmoid(gates[:, :3 * H2])            # i | f | o
        g = jnp.tanh(gates[:, 3 * H2:])                    # candidate only
        c = sig[:, H2:2 * H2] * c + sig[:, :H2] * g
        h = sig[:, 2 * H2:3 * H2] * jnp.tanh(c)

    # (3) h already equals cat(h_n[0], h_n[1], dim=1); project + ReLU.
    proj = (jnp.dot(h, wout_ref[...], preferred_element_type=jnp.float32)
            + bout_ref[...])
    out_ref[...] = jnp.maximum(proj, 0.0)


def seq2seq_abstractive_encoder(x_ids, hidden, fused):
    """Forward pass equivalent to Seq2SeqAbstractiveEncoder.forward."""
    B, T = x_ids.shape
    H = fused["hidden"]

    # Only tiny int32 index plumbing stays outside the kernel (transpose/flip
    # of T*B ints); embedding gather, input GEMM, bias and direction handling
    # all live inside the kernel's one-hot GEMM.
    ids_t = x_ids.astype(jnp.int32).T                      # (T, B) t-major
    ids_f = ids_t.reshape(T * B, 1)
    ids_b = ids_t[::-1].reshape(T * B, 1)

    h0, c0 = hidden                                        # each (2, B, H)

    vmem = functools.partial(pl.BlockSpec, memory_space=pltpu.MemorySpace.VMEM)
    return pl.pallas_call(
        _bilstm_encoder_kernel,
        out_shape=jax.ShapeDtypeStruct((B, H), jnp.float32),
        in_specs=[vmem()] * 8,
        out_specs=vmem(),
        scratch_shapes=[pltpu.VMEM((T * B, 8 * H), jnp.float32)],
    )(ids_f, ids_b, h0, c0,
      fused["w_emb_gates"], fused["w_hh"], fused["w_out"], fused["b_out"])


def _reference(x_ids, hidden, params):
    """Pure-JAX reference replicating PyTorch BiLSTM semantics."""
    emb = jnp.take(params["embedding"], x_ids, axis=0).transpose(1, 0, 2)
    h0, c0 = hidden
    H = params["embedding"].shape[1]

    def cell(x_t, h, c, wih, whh, b):
        gates = x_t @ wih + h @ whh + b
        i = jax.nn.sigmoid(gates[:, :H])
        f = jax.nn.sigmoid(gates[:, H:2 * H])
        g = jnp.tanh(gates[:, 2 * H:3 * H])
        o = jax.nn.sigmoid(gates[:, 3 * H:])
        c = f * c + i * g
        h = o * jnp.tanh(c)
        return h, c

    h_f, c_f = h0[0], c0[0]
    for t in range(emb.shape[0]):
        h_f, c_f = cell(emb[t], h_f, c_f,
                        params["w_ih"][0], params["w_hh"][0], params["b"][0])
    h_b, c_b = h0[1], c0[1]
    for t in range(emb.shape[0] - 1, -1, -1):
        h_b, c_b = cell(emb[t], h_b, c_b,
                        params["w_ih"][1], params["w_hh"][1], params["b"][1])
    concat = jnp.concatenate([h_f, h_b], axis=1)
    return jnp.maximum(concat @ params["w_out"] + params["b_out"], 0.0)


if __name__ == "__main__":
    # Small shapes consistent with the module:
    #   vocab=50, hidden_size = data_dim = 32, batch=2, seq=8, bidirectional.
    VOCAB, H, B, T = 50, 32, 2, 8
    key = jax.random.PRNGKey(0)
    keys = jax.random.split(key, 8)
    scale = 1.0 / np.sqrt(H)

    params = {
        # nn.Embedding.from_pretrained(pretrain_embedding): (vocab, data_dim)
        "embedding": jax.random.normal(keys[0], (VOCAB, H), jnp.float32),
        # LSTM weights, pre-transposed to (in, out); leading dim = direction.
        "w_ih": jax.random.uniform(keys[1], (2, H, 4 * H), jnp.float32,
                                   -scale, scale),
        "w_hh": jax.random.uniform(keys[2], (2, H, 4 * H), jnp.float32,
                                   -scale, scale),
        # combined bias b_ih + b_hh, kept 2-D per direction for TPU layout
        "b": jax.random.uniform(keys[3], (2, 1, 4 * H), jnp.float32,
                                -scale, scale),
        # nn.Linear(2H, H), pre-transposed to (2H, H)
        "w_out": jax.random.uniform(keys[4], (2 * H, H), jnp.float32,
                                    -scale, scale),
        "b_out": jax.random.uniform(keys[5], (1, H), jnp.float32,
                                    -scale, scale),
    }

    x_ids = jax.random.randint(keys[6], (B, T), 0, VOCAB, dtype=jnp.int32)
    # initHidden: zeros of shape (2, B, H) for both h0 and c0 (bidirectional)
    h0 = jnp.zeros((2, B, H), jnp.float32)
    c0 = jnp.zeros((2, B, H), jnp.float32)

    # One-time parameter fusion (outside the per-call path), then a jitted
    # forward that closes over the fused constants.
    fused = jax.tree_util.tree_map(
        lambda x: jax.block_until_ready(x) if isinstance(x, jax.Array) else x,
        prepare_encoder_params(params))
    fwd = jax.jit(lambda ids, hid: seq2seq_abstractive_encoder(ids, hid, fused))

    out = jax.block_until_ready(fwd(x_ids, (h0, c0)))

    ref = _reference(x_ids, (h0, c0), params)
    np.testing.assert_allclose(np.asarray(out), np.asarray(ref),
                               rtol=1e-4, atol=1e-4)
    print("KERNEL_OK")
</pallas_src>

<mosaic_0001>
module attributes {stable_mosaic.version = 11 : i64} {
  func.func @_bilstm_encoder_kernel(%arg0: memref<16x1xi32, #tpu.memory_space<vmem>>, %arg1: memref<16x1xi32, #tpu.memory_space<vmem>>, %arg2: memref<2x2x32xf32, #tpu.memory_space<vmem>>, %arg3: memref<2x2x32xf32, #tpu.memory_space<vmem>>, %arg4: memref<101x256xf32, #tpu.memory_space<vmem>>, %arg5: memref<64x256xf32, #tpu.memory_space<vmem>>, %arg6: memref<64x32xf32, #tpu.memory_space<vmem>>, %arg7: memref<1x32xf32, #tpu.memory_space<vmem>>, %arg8: memref<2x32xf32, #tpu.memory_space<vmem>>, %arg9: memref<16x256xf32, #tpu.memory_space<vmem>>) attributes {dimension_semantics = [], scalar_prefetch = 0 : i64, scratch_operands = 1 : i64, tpu.core_type = #tpu.core_type<tc>} {
    %0 = tpu.iota {dimensions = array<i32: 1>} : vector<16x101xi32>
    %c0 = arith.constant 0 : index
    %c0_0 = arith.constant 0 : index
    %1 = vector.load %arg0[%c0, %c0_0] : memref<16x1xi32, #tpu.memory_space<vmem>>, vector<16x1xi32>
    %2 = vector.broadcast %1 : vector<16x1xi32> to vector<16x101xi32>
    %3 = arith.cmpi eq, %0, %2 : vector<16x101xi32>
    %c0_1 = arith.constant 0 : index
    %c0_2 = arith.constant 0 : index
    %4 = vector.load %arg1[%c0_1, %c0_2] : memref<16x1xi32, #tpu.memory_space<vmem>>, vector<16x1xi32>
    %c50_i32 = arith.constant 50 : i32
    %5 = vector.broadcast %c50_i32 : i32 to vector<16x1xi32>
    %6 = arith.addi %4, %5 : vector<16x1xi32>
    %7 = vector.broadcast %6 : vector<16x1xi32> to vector<16x101xi32>
    %8 = arith.cmpi eq, %0, %7 : vector<16x101xi32>
    %9 = arith.ori %3, %8 : vector<16x101xi1>
    %c100_i32 = arith.constant 100 : i32
    %10 = vector.broadcast %c100_i32 : i32 to vector<16x101xi32>
    %11 = arith.cmpi eq, %0, %10 : vector<16x101xi32>
    %12 = arith.ori %9, %11 : vector<16x101xi1>
    %cst = arith.constant 1.000000e+00 : f32
    %cst_3 = arith.constant 0.000000e+00 : f32
    %13 = vector.broadcast %cst : f32 to vector<16x101xf32>
    %14 = vector.broadcast %cst_3 : f32 to vector<16x101xf32>
    %15 = arith.select %12, %13, %14 : vector<16x101xi1>, vector<16x101xf32>
    %c0_4 = arith.constant 0 : index
    %c0_5 = arith.constant 0 : index
    %16 = vector.load %arg4[%c0_4, %c0_5] : memref<101x256xf32, #tpu.memory_space<vmem>>, vector<101x256xf32>
    %cst_6 = arith.constant dense<0.000000e+00> : vector<16x256xf32>
    %17 = tpu.matmul %15, %16, %cst_6 {dimension_numbers = #tpu.dot_dimension_numbers<[1], [0], [0], [1], [0, 0, 1, 1], [], []>} : vector<16x101xf32>, vector<101x256xf32>, vector<16x256xf32> -> vector<16x256xf32>
    %c0_7 = arith.constant 0 : index
    %c0_8 = arith.constant 0 : index
    %18 = vector.load %arg9[%c0_7, %c0_8] : memref<16x256xf32, #tpu.memory_space<vmem>>, vector<16x256xf32>
    tpu.vector_store %arg9[%c0_7, %c0_8], %17 {strides = array<i32>} : memref<16x256xf32, #tpu.memory_space<vmem>>, vector<16x256xf32>,
    %c0_9 = arith.constant 0 : index
    %c0_10 = arith.constant 0 : index
    %c0_11 = arith.constant 0 : index
    %19 = vector.load %arg2[%c0_9, %c0_10, %c0_11] : memref<2x2x32xf32, #tpu.memory_space<vmem>>, vector<1x2x32xf32>
    %20 = vector.shape_cast %19 : vector<1x2x32xf32> to vector<2x32xf32>
    %c1 = arith.constant 1 : index
    %c0_12 = arith.constant 0 : index
    %c0_13 = arith.constant 0 : index
    %21 = vector.load %arg2[%c1, %c0_12, %c0_13] : memref<2x2x32xf32, #tpu.memory_space<vmem>>, vector<1x2x32xf32>
    %22 = vector.shape_cast %21 : vector<1x2x32xf32> to vector<2x32xf32>
    %23 = tpu.concatenate %20, %22 in 1 : vector<2x32xf32>, vector<2x32xf32> -> vector<2x64xf32>
    %c0_14 = arith.constant 0 : index
    %c0_15 = arith.constant 0 : index
    %c0_16 = arith.constant 0 : index
    %24 = vector.load %arg3[%c0_14, %c0_15, %c0_16] : memref<2x2x32xf32, #tpu.memory_space<vmem>>, vector<1x2x32xf32>
    %25 = vector.shape_cast %24 : vector<1x2x32xf32> to vector<2x32xf32>
    %c1_17 = arith.constant 1 : index
    %c0_18 = arith.constant 0 : index
    %c0_19 = arith.constant 0 : index
    %26 = vector.load %arg3[%c1_17, %c0_18, %c0_19] : memref<2x2x32xf32, #tpu.memory_space<vmem>>, vector<1x2x32xf32>
    %27 = vector.shape_cast %26 : vector<1x2x32xf32> to vector<2x32xf32>
    %28 = tpu.concatenate %25, %27 in 1 : vector<2x32xf32>, vector<2x32xf32> -> vector<2x64xf32>
    %c0_20 = arith.constant 0 : index
    %c0_21 = arith.constant 0 : index
    %29 = vector.load %arg5[%c0_20, %c0_21] : memref<64x256xf32, #tpu.memory_space<vmem>>, vector<64x256xf32>
    %cst_22 = arith.constant dense<0.000000e+00> : vector<2x256xf32>
    %30 = tpu.matmul %23, %29, %cst_22 {dimension_numbers = #tpu.dot_dimension_numbers<[1], [0], [0], [1], [0, 0, 1, 1], [], []>} : vector<2x64xf32>, vector<64x256xf32>, vector<2x256xf32> -> vector<2x256xf32>
    %c0_23 = arith.constant 0 : index
    %c0_24 = arith.constant 0 : index
    %31 = vector.load %arg9[%c0_23, %c0_24] : memref<16x256xf32, #tpu.memory_space<vmem>>, vector<2x256xf32>
    %32 = arith.addf %30, %31 : vector<2x256xf32>
    %33 = vector.extract_strided_slice %32 {offsets = [0, 0], sizes = [2, 192], strides = [1, 1]} : vector<2x256xf32> to vector<2x192xf32>
    %34 = arith.negf %33 : vector<2x192xf32>
    %35 = math.exp %34 : vector<2x192xf32>
    %cst_25 = arith.constant 1.000000e+00 : f32
    %36 = vector.broadcast %cst_25 : f32 to vector<2x192xf32>
    %37 = arith.addf %36, %35 : vector<2x192xf32>
    %38 = arith.divf %36, %37 : vector<2x192xf32>
    %39 = vector.extract_strided_slice %32 {offsets = [0, 192], sizes = [2, 64], strides = [1, 1]} : vector<2x256xf32> to vector<2x64xf32>
    %40 = math.tanh %39 : vector<2x64xf32>
    %41 = vector.extract_strided_slice %38 {offsets = [0, 64], sizes = [2, 64], strides = [1, 1]} : vector<2x192xf32> to vector<2x64xf32>
    %42 = arith.mulf %41, %28 : vector<2x64xf32>
    %43 = vector.extract_strided_slice %38 {offsets = [0, 0], sizes = [2, 64], strides = [1, 1]} : vector<2x192xf32> to vector<2x64xf32>
    %44 = arith.mulf %43, %40 : vector<2x64xf32>
    %45 = arith.addf %42, %44 : vector<2x64xf32>
    %46 = vector.extract_strided_slice %38 {offsets = [0, 128], sizes = [2, 64], strides = [1, 1]} : vector<2x192xf32> to vector<2x64xf32>
    %47 = math.tanh %45 : vector<2x64xf32>
    %48 = arith.mulf %46, %47 : vector<2x64xf32>
    %c0_26 = arith.constant 0 : index
    %c0_27 = arith.constant 0 : index
    %49 = vector.load %arg5[%c0_26, %c0_27] : memref<64x256xf32, #tpu.memory_space<vmem>>, vector<64x256xf32>
    %cst_28 = arith.constant dense<0.000000e+00> : vector<2x256xf32>
    %50 = tpu.matmul %48, %49, %cst_28 {dimension_numbers = #tpu.dot_dimension_numbers<[1], [0], [0], [1], [0, 0, 1, 1], [], []>} : vector<2x64xf32>, vector<64x256xf32>, vector<2x256xf32> -> vector<2x256xf32>
    %c2 = arith.constant 2 : index
    %c0_29 = arith.constant 0 : index
    %51 = vector.load %arg9[%c2, %c0_29] : memref<16x256xf32, #tpu.memory_space<vmem>>, vector<2x256xf32>
    %52 = arith.addf %50, %51 : vector<2x256xf32>
    %53 = vector.extract_strided_slice %52 {offsets = [0, 0], sizes = [2, 192], strides = [1, 1]} : vector<2x256xf32> to vector<2x192xf32>
    %54 = arith.negf %53 : vector<2x192xf32>
    %55 = math.exp %54 : vector<2x192xf32>
    %cst_30 = arith.constant 1.000000e+00 : f32
    %56 = vector.broadcast %cst_30 : f32 to vector<2x192xf32>
    %57 = arith.addf %56, %55 : vector<2x192xf32>
    %58 = arith.divf %56, %57 : vector<2x192xf32>
    %59 = vector.extract_strided_slice %52 {offsets = [0, 192], sizes = [2, 64], strides = [1, 1]} : vector<2x256xf32> to vector<2x64xf32>
    %60 = math.tanh %59 : vector<2x64xf32>
    %61 = vector.extract_strided_slice %58 {offsets = [0, 64], sizes = [2, 64], strides = [1, 1]} : vector<2x192xf32> to vector<2x64xf32>
    %62 = arith.mulf %61, %45 : vector<2x64xf32>
    %63 = vector.extract_strided_slice %58 {offsets = [0, 0], sizes = [2, 64], strides = [1, 1]} : vector<2x192xf32> to vector<2x64xf32>
    %64 = arith.mulf %63, %60 : vector<2x64xf32>
    %65 = arith.addf %62, %64 : vector<2x64xf32>
    %66 = vector.extract_strided_slice %58 {offsets = [0, 128], sizes = [2, 64], strides = [1, 1]} : vector<2x192xf32> to vector<2x64xf32>
    %67 = math.tanh %65 : vector<2x64xf32>
    %68 = arith.mulf %66, %67 : vector<2x64xf32>
    %c0_31 = arith.constant 0 : index
    %c0_32 = arith.constant 0 : index
    %69 = vector.load %arg5[%c0_31, %c0_32] : memref<64x256xf32, #tpu.memory_space<vmem>>, vector<64x256xf32>
    %cst_33 = arith.constant dense<0.000000e+00> : vector<2x256xf32>
    %70 = tpu.matmul %68, %69, %cst_33 {dimension_numbers = #tpu.dot_dimension_numbers<[1], [0], [0], [1], [0, 0, 1, 1], [], []>} : vector<2x64xf32>, vector<64x256xf32>, vector<2x256xf32> -> vector<2x256xf32>
    %c4 = arith.constant 4 : index
    %c0_34 = arith.constant 0 : index
    %71 = vector.load %arg9[%c4, %c0_34] : memref<16x256xf32, #tpu.memory_space<vmem>>, vector<2x256xf32>
    %72 = arith.addf %70, %71 : vector<2x256xf32>
    %73 = vector.extract_strided_slice %72 {offsets = [0, 0], sizes = [2, 192], strides = [1, 1]} : vector<2x256xf32> to vector<2x192xf32>
    %74 = arith.negf %73 : vector<2x192xf32>
    %75 = math.exp %74 : vector<2x192xf32>
    %cst_35 = arith.constant 1.000000e+00 : f32
    %76 = vector.broadcast %cst_35 : f32 to vector<2x192xf32>
    %77 = arith.addf %76, %75 : vector<2x192xf32>
    %78 = arith.divf %76, %77 : vector<2x192xf32>
    %79 = vector.extract_strided_slice %72 {offsets = [0, 192], sizes = [2, 64], strides = [1, 1]} : vector<2x256xf32> to vector<2x64xf32>
    %80 = math.tanh %79 : vector<2x64xf32>
    %81 = vector.extract_strided_slice %78 {offsets = [0, 64], sizes = [2, 64], strides = [1, 1]} : vector<2x192xf32> to vector<2x64xf32>
    %82 = arith.mulf %81, %65 : vector<2x64xf32>
    %83 = vector.extract_strided_slice %78 {offsets = [0, 0], sizes = [2, 64], strides = [1, 1]} : vector<2x192xf32> to vector<2x64xf32>
    %84 = arith.mulf %83, %80 : vector<2x64xf32>
    %85 = arith.addf %82, %84 : vector<2x64xf32>
    %86 = vector.extract_strided_slice %78 {offsets = [0, 128], sizes = [2, 64], strides = [1, 1]} : vector<2x192xf32> to vector<2x64xf32>
    %87 = math.tanh %85 : vector<2x64xf32>
    %88 = arith.mulf %86, %87 : vector<2x64xf32>
    %c0_36 = arith.constant 0 : index
    %c0_37 = arith.constant 0 : index
    %89 = vector.load %arg5[%c0_36, %c0_37] : memref<64x256xf32, #tpu.memory_space<vmem>>, vector<64x256xf32>
    %cst_38 = arith.constant dense<0.000000e+00> : vector<2x256xf32>
    %90 = tpu.matmul %88, %89, %cst_38 {dimension_numbers = #tpu.dot_dimension_numbers<[1], [0], [0], [1], [0, 0, 1, 1], [], []>} : vector<2x64xf32>, vector<64x256xf32>, vector<2x256xf32> -> vector<2x256xf32>
    %c6 = arith.constant 6 : index
    %c0_39 = arith.constant 0 : index
    %91 = vector.load %arg9[%c6, %c0_39] : memref<16x256xf32, #tpu.memory_space<vmem>>, vector<2x256xf32>
    %92 = arith.addf %90, %91 : vector<2x256xf32>
    %93 = vector.extract_strided_slice %92 {offsets = [0, 0], sizes = [2, 192], strides = [1, 1]} : vector<2x256xf32> to vector<2x192xf32>
    %94 = arith.negf %93 : vector<2x192xf32>
    %95 = math.exp %94 : vector<2x192xf32>
    %cst_40 = arith.constant 1.000000e+00 : f32
    %96 = vector.broadcast %cst_40 : f32 to vector<2x192xf32>
    %97 = arith.addf %96, %95 : vector<2x192xf32>
    %98 = arith.divf %96, %97 : vector<2x192xf32>
    %99 = vector.extract_strided_slice %92 {offsets = [0, 192], sizes = [2, 64], strides = [1, 1]} : vector<2x256xf32> to vector<2x64xf32>
    %100 = math.tanh %99 : vector<2x64xf32>
    %101 = vector.extract_strided_slice %98 {offsets = [0, 64], sizes = [2, 64], strides = [1, 1]} : vector<2x192xf32> to vector<2x64xf32>
    %102 = arith.mulf %101, %85 : vector<2x64xf32>
    %103 = vector.extract_strided_slice %98 {offsets = [0, 0], sizes = [2, 64], strides = [1, 1]} : vector<2x192xf32> to vector<2x64xf32>
    %104 = arith.mulf %103, %100 : vector<2x64xf32>
    %105 = arith.addf %102, %104 : vector<2x64xf32>
    %106 = vector.extract_strided_slice %98 {offsets = [0, 128], sizes = [2, 64], strides = [1, 1]} : vector<2x192xf32> to vector<2x64xf32>
    %107 = math.tanh %105 : vector<2x64xf32>
    %108 = arith.mulf %106, %107 : vector<2x64xf32>
    %c0_41 = arith.constant 0 : index
    %c0_42 = arith.constant 0 : index
    %109 = vector.load %arg5[%c0_41, %c0_42] : memref<64x256xf32, #tpu.memory_space<vmem>>, vector<64x256xf32>
    %cst_43 = arith.constant dense<0.000000e+00> : vector<2x256xf32>
    %110 = tpu.matmul %108, %109, %cst_43 {dimension_numbers = #tpu.dot_dimension_numbers<[1], [0], [0], [1], [0, 0, 1, 1], [], []>} : vector<2x64xf32>, vector<64x256xf32>, vector<2x256xf32> -> vector<2x256xf32>
    %c8 = arith.constant 8 : index
    %c0_44 = arith.constant 0 : index
    %111 = vector.load %arg9[%c8, %c0_44] : memref<16x256xf32, #tpu.memory_space<vmem>>, vector<2x256xf32>
    %112 = arith.addf %110, %111 : vector<2x256xf32>
    %113 = vector.extract_strided_slice %112 {offsets = [0, 0], sizes = [2, 192], strides = [1, 1]} : vector<2x256xf32> to vector<2x192xf32>
    %114 = arith.negf %113 : vector<2x192xf32>
    %115 = math.exp %114 : vector<2x192xf32>
    %cst_45 = arith.constant 1.000000e+00 : f32
    %116 = vector.broadcast %cst_45 : f32 to vector<2x192xf32>
    %117 = arith.addf %116, %115 : vector<2x192xf32>
    %118 = arith.divf %116, %117 : vector<2x192xf32>
    %119 = vector.extract_strided_slice %112 {offsets = [0, 192], sizes = [2, 64], strides = [1, 1]} : vector<2x256xf32> to vector<2x64xf32>
    %120 = math.tanh %119 : vector<2x64xf32>
    %121 = vector.extract_strided_slice %118 {offsets = [0, 64], sizes = [2, 64], strides = [1, 1]} : vector<2x192xf32> to vector<2x64xf32>
    %122 = arith.mulf %121, %105 : vector<2x64xf32>
    %123 = vector.extract_strided_slice %118 {offsets = [0, 0], sizes = [2, 64], strides = [1, 1]} : vector<2x192xf32> to vector<2x64xf32>
    %124 = arith.mulf %123, %120 : vector<2x64xf32>
    %125 = arith.addf %122, %124 : vector<2x64xf32>
    %126 = vector.extract_strided_slice %118 {offsets = [0, 128], sizes = [2, 64], strides = [1, 1]} : vector<2x192xf32> to vector<2x64xf32>
    %127 = math.tanh %125 : vector<2x64xf32>
    %128 = arith.mulf %126, %127 : vector<2x64xf32>
    %c0_46 = arith.constant 0 : index
    %c0_47 = arith.constant 0 : index
    %129 = vector.load %arg5[%c0_46, %c0_47] : memref<64x256xf32, #tpu.memory_space<vmem>>, vector<64x256xf32>
    %cst_48 = arith.constant dense<0.000000e+00> : vector<2x256xf32>
    %130 = tpu.matmul %128, %129, %cst_48 {dimension_numbers = #tpu.dot_dimension_numbers<[1], [0], [0], [1], [0, 0, 1, 1], [], []>} : vector<2x64xf32>, vector<64x256xf32>, vector<2x256xf32> -> vector<2x256xf32>
    %c10 = arith.constant 10 : index
    %c0_49 = arith.constant 0 : index
    %131 = vector.load %arg9[%c10, %c0_49] : memref<16x256xf32, #tpu.memory_space<vmem>>, vector<2x256xf32>
    %132 = arith.addf %130, %131 : vector<2x256xf32>
    %133 = vector.extract_strided_slice %132 {offsets = [0, 0], sizes = [2, 192], strides = [1, 1]} : vector<2x256xf32> to vector<2x192xf32>
    %134 = arith.negf %133 : vector<2x192xf32>
    %135 = math.exp %134 : vector<2x192xf32>
    %cst_50 = arith.constant 1.000000e+00 : f32
    %136 = vector.broadcast %cst_50 : f32 to vector<2x192xf32>
    %137 = arith.addf %136, %135 : vector<2x192xf32>
    %138 = arith.divf %136, %137 : vector<2x192xf32>
    %139 = vector.extract_strided_slice %132 {offsets = [0, 192], sizes = [2, 64], strides = [1, 1]} : vector<2x256xf32> to vector<2x64xf32>
    %140 = math.tanh %139 : vector<2x64xf32>
    %141 = vector.extract_strided_slice %138 {offsets = [0, 64], sizes = [2, 64], strides = [1, 1]} : vector<2x192xf32> to vector<2x64xf32>
    %142 = arith.mulf %141, %125 : vector<2x64xf32>
    %143 = vector.extract_strided_slice %138 {offsets = [0, 0], sizes = [2, 64], strides = [1, 1]} : vector<2x192xf32> to vector<2x64xf32>
    %144 = arith.mulf %143, %140 : vector<2x64xf32>
    %145 = arith.addf %142, %144 : vector<2x64xf32>
    %146 = vector.extract_strided_slice %138 {offsets = [0, 128], sizes = [2, 64], strides = [1, 1]} : vector<2x192xf32> to vector<2x64xf32>
    %147 = math.tanh %145 : vector<2x64xf32>
    %148 = arith.mulf %146, %147 : vector<2x64xf32>
    %c0_51 = arith.constant 0 : index
    %c0_52 = arith.constant 0 : index
    %149 = vector.load %arg5[%c0_51, %c0_52] : memref<64x256xf32, #tpu.memory_space<vmem>>, vector<64x256xf32>
    %cst_53 = arith.constant dense<0.000000e+00> : vector<2x256xf32>
    %150 = tpu.matmul %148, %149, %cst_53 {dimension_numbers = #tpu.dot_dimension_numbers<[1], [0], [0], [1], [0, 0, 1, 1], [], []>} : vector<2x64xf32>, vector<64x256xf32>, vector<2x256xf32> -> vector<2x256xf32>
    %c12 = arith.constant 12 : index
    %c0_54 = arith.constant 0 : index
    %151 = vector.load %arg9[%c12, %c0_54] : memref<16x256xf32, #tpu.memory_space<vmem>>, vector<2x256xf32>
    %152 = arith.addf %150, %151 : vector<2x256xf32>
    %153 = vector.extract_strided_slice %152 {offsets = [0, 0], sizes = [2, 192], strides = [1, 1]} : vector<2x256xf32> to vector<2x192xf32>
    %154 = arith.negf %153 : vector<2x192xf32>
    %155 = math.exp %154 : vector<2x192xf32>
    %cst_55 = arith.constant 1.000000e+00 : f32
    %156 = vector.broadcast %cst_55 : f32 to vector<2x192xf32>
    %157 = arith.addf %156, %155 : vector<2x192xf32>
    %158 = arith.divf %156, %157 : vector<2x192xf32>
    %159 = vector.extract_strided_slice %152 {offsets = [0, 192], sizes = [2, 64], strides = [1, 1]} : vector<2x256xf32> to vector<2x64xf32>
    %160 = math.tanh %159 : vector<2x64xf32>
    %161 = vector.extract_strided_slice %158 {offsets = [0, 64], sizes = [2, 64], strides = [1, 1]} : vector<2x192xf32> to vector<2x64xf32>
    %162 = arith.mulf %161, %145 : vector<2x64xf32>
    %163 = vector.extract_strided_slice %158 {offsets = [0, 0], sizes = [2, 64], strides = [1, 1]} : vector<2x192xf32> to vector<2x64xf32>
    %164 = arith.mulf %163, %160 : vector<2x64xf32>
    %165 = arith.addf %162, %164 : vector<2x64xf32>
    %166 = vector.extract_strided_slice %158 {offsets = [0, 128], sizes = [2, 64], strides = [1, 1]} : vector<2x192xf32> to vector<2x64xf32>
    %167 = math.tanh %165 : vector<2x64xf32>
    %168 = arith.mulf %166, %167 : vector<2x64xf32>
    %c0_56 = arith.constant 0 : index
    %c0_57 = arith.constant 0 : index
    %169 = vector.load %arg5[%c0_56, %c0_57] : memref<64x256xf32, #tpu.memory_space<vmem>>, vector<64x256xf32>
    %cst_58 = arith.constant dense<0.000000e+00> : vector<2x256xf32>
    %170 = tpu.matmul %168, %169, %cst_58 {dimension_numbers = #tpu.dot_dimension_numbers<[1], [0], [0], [1], [0, 0, 1, 1], [], []>} : vector<2x64xf32>, vector<64x256xf32>, vector<2x256xf32> -> vector<2x256xf32>
    %c14 = arith.constant 14 : index
    %c0_59 = arith.constant 0 : index
    %171 = vector.load %arg9[%c14, %c0_59] : memref<16x256xf32, #tpu.memory_space<vmem>>, vector<2x256xf32>
    %172 = arith.addf %170, %171 : vector<2x256xf32>
    %173 = vector.extract_strided_slice %172 {offsets = [0, 0], sizes = [2, 192], strides = [1, 1]} : vector<2x256xf32> to vector<2x192xf32>
    %174 = arith.negf %173 : vector<2x192xf32>
    %175 = math.exp %174 : vector<2x192xf32>
    %cst_60 = arith.constant 1.000000e+00 : f32
    %176 = vector.broadcast %cst_60 : f32 to vector<2x192xf32>
    %177 = arith.addf %176, %175 : vector<2x192xf32>
    %178 = arith.divf %176, %177 : vector<2x192xf32>
    %179 = vector.extract_strided_slice %172 {offsets = [0, 192], sizes = [2, 64], strides = [1, 1]} : vector<2x256xf32> to vector<2x64xf32>
    %180 = math.tanh %179 : vector<2x64xf32>
    %181 = vector.extract_strided_slice %178 {offsets = [0, 64], sizes = [2, 64], strides = [1, 1]} : vector<2x192xf32> to vector<2x64xf32>
    %182 = arith.mulf %181, %165 : vector<2x64xf32>
    %183 = vector.extract_strided_slice %178 {offsets = [0, 0], sizes = [2, 64], strides = [1, 1]} : vector<2x192xf32> to vector<2x64xf32>
    %184 = arith.mulf %183, %180 : vector<2x64xf32>
    %185 = arith.addf %182, %184 : vector<2x64xf32>
    %186 = vector.extract_strided_slice %178 {offsets = [0, 128], sizes = [2, 64], strides = [1, 1]} : vector<2x192xf32> to vector<2x64xf32>
    %187 = math.tanh %185 : vector<2x64xf32>
    %188 = arith.mulf %186, %187 : vector<2x64xf32>
    %c0_61 = arith.constant 0 : index
    %c0_62 = arith.constant 0 : index
    %189 = vector.load %arg6[%c0_61, %c0_62] : memref<64x32xf32, #tpu.memory_space<vmem>>, vector<64x32xf32>
    %cst_63 = arith.constant dense<0.000000e+00> : vector<2x32xf32>
    %190 = tpu.matmul %188, %189, %cst_63 {dimension_numbers = #tpu.dot_dimension_numbers<[1], [0], [0], [1], [0, 0, 1, 1], [], []>} : vector<2x64xf32>, vector<64x32xf32>, vector<2x32xf32> -> vector<2x32xf32>
    %c0_64 = arith.constant 0 : index
    %c0_65 = arith.constant 0 : index
    %191 = vector.load %arg7[%c0_64, %c0_65] : memref<1x32xf32, #tpu.memory_space<vmem>>, vector<1x32xf32>
    %192 = vector.broadcast %191 : vector<1x32xf32> to vector<2x32xf32>
    %193 = arith.addf %190, %192 : vector<2x32xf32>
    %cst_66 = arith.constant 0.000000e+00 : f32
    %194 = vector.broadcast %cst_66 : f32 to vector<2x32xf32>
    %195 = arith.maximumf %193, %194 : vector<2x32xf32>
    %c0_67 = arith.constant 0 : index
    %c0_68 = arith.constant 0 : index
    %196 = vector.load %arg8[%c0_67, %c0_68] : memref<2x32xf32, #tpu.memory_space<vmem>>, vector<2x32xf32>
    tpu.vector_store %arg8[%c0_67, %c0_68], %195 {strides = array<i32>} : memref<2x32xf32, #tpu.memory_space<vmem>>, vector<2x32xf32>,
    return
  }
}

</mosaic_0001>

<llo_original>
// kernel: _lambda_.1
$region0: #{_lambda_.1}
  #allocation0 [shape = 'u32[]', space=smem, size = 0x4, offset = 0x4, fixed_abs, tag = 'smem constant byte address 0x4 - core index']
  #allocation1 [shape = 'u32[72,128]{1,0:T(1,128)}', space=vmem, size = 0x9000, scoped, tag = 'internal scratch']
  #allocation2 [shape = 'f32[16,256]{1,0:T(8,128)}', space=vmem, size = 0x4000, scoped, tag = 'scratch operand']
  %s0 = inlined_call_operand.vmem [shape: s32[16,1], index: 0, kind: input, shape index: {}]
  %s1 = inlined_call_operand.vmem [shape: s32[16,1], index: 1, kind: input, shape index: {}]
  %s2 = inlined_call_operand.vmem [shape: f32[2,2,32], index: 2, kind: input, shape index: {}]
  %s3 = inlined_call_operand.vmem [shape: f32[2,2,32], index: 3, kind: input, shape index: {}]
  %s4 = inlined_call_operand.hbm [shape: f32[101,256], index: 4, kind: input, shape index: {}]
  %s5 = inlined_call_operand.hbm [shape: f32[64,256], index: 5, kind: input, shape index: {}]
  %s6 = inlined_call_operand.hbm [shape: f32[64,32], index: 6, kind: input, shape index: {}]
  %s7 = inlined_call_operand.vmem [shape: f32[1,32], index: 7, kind: input, shape index: {}]
  %s8 = inlined_call_operand.hbm [shape: f32[2,32], index: 8, kind: output, shape index: {}]
  %s9 = sld [smem:[#allocation0]]
  $region54: #{_lambda_.1} parent=0
    _
  %s11 = ssub.s32 1, %s9
  %s12 = scalar_select 0, %s11, %s9
  $region1: #{_lambda_.1} parent=0
    #allocation3 [shape = 'u8[106496]{0}', space=vmem, size = 0x1a000, scoped, tag = 'input window, operand 4, single buffered']
    #allocation4 [shape = 's32[1]{0}', space=sflag, size = 0x4, scoped, tag = 'scoped memory for _lambda_.1']
    #allocation5 [shape = 's32[1]{0}', space=sflag, size = 0x4, scoped, tag = 'scoped memory for _lambda_.1']
    #allocation6 [shape = 'u8[65536]{0}', space=vmem, size = 0x10000, scoped, tag = 'input window, operand 5, single buffered']
    #allocation7 [shape = 's32[1]{0}', space=sflag, size = 0x4, scoped, tag = 'scoped memory for _lambda_.1']
    #allocation8 [shape = 'u8[32768]{0}', space=vmem, size = 0x8000, scoped, tag = 'input window, operand 6, single buffered']
    #allocation9 [shape = 'u8[1024]{0}', space=vmem, size = 0x400, scoped, tag = 'output window, operand 0, single buffered']
    %13 = vsyncpa [#allocation4], 0
    %14 = vsyncpa [#allocation7], 0
    %15 = vsyncpa [#allocation5], 0
    // Predicated region
    $region2: #{_lambda_.1} parent=1 // pred_check
      _
    $region3: #{_lambda_.1} parent=1 // pred_check_branch
      %17 = sbr.rel (0) target = $region5
    $region4: #{_lambda_.1} parent=1 // pred_region
      _
    $region5: #{_lambda_.1} parent=1 // pred_fallthru
      _
    // Predicated region
    $region6: #{_lambda_.1} parent=1 // pred_check
      _
    $region7: #{_lambda_.1} parent=1 // pred_check_branch
      %19 = sbr.rel (0) target = $region9
    $region8: #{_lambda_.1} parent=1 // pred_region
      _
    $region9: #{_lambda_.1} parent=1 // pred_fallthru
      _
    // Predicated region
    $region10: #{_lambda_.1} parent=1 // pred_check
      _
    $region11: #{_lambda_.1} parent=1 // pred_check_branch
      %21 = sbr.rel (0) target = $region13
    $region12: #{_lambda_.1} parent=1 // pred_region
      _
    $region13: #{_lambda_.1} parent=1 // pred_fallthru
      _
    // Predicated region
    $region14: #{_lambda_.1} parent=1 // pred_check
      _
    $region15: #{_lambda_.1} parent=1 // pred_check_branch
      %23 = sbr.rel (0) target = $region17
    $region16: #{_lambda_.1} parent=1 // pred_region
      _
    $region17: #{_lambda_.1} parent=1 // pred_fallthru
      _
    // Predicated region
    $region18: #{_lambda_.1} parent=1 // pred_check
      _
    $region19: #{_lambda_.1} parent=1 // pred_check_branch
      %25 = sbr.rel (0) target = $region21
    $region20: #{_lambda_.1} parent=1 // pred_region
      %27 = vsyncadd [#allocation4], 0
      %s28 = sshll.u32 %s4, 4
      %s29 = int_to_ptr.hbm [resolvable:$true] %s28
      %s30 = sshll.u32 [#allocation3], 4
      %s31 = int_to_ptr.vmem [resolvable:$true] %s30
      %36 = dma.hbm_to_vmem [thread:$0]  %s29, 3328, %s31, [#allocation4], 256, 256, 16
    $region21: #{_lambda_.1} parent=1 // pred_fallthru
      _
    // Predicated region
    $region22: #{_lambda_.1} parent=1 // pred_check
      _
    $region23: #{_lambda_.1} parent=1 // pred_check_branch
      %38 = sbr.rel (0) target = $region25
    $region24: #{_lambda_.1} parent=1 // pred_region
      %40 = vsyncadd [#allocation7], 0
      %s41 = sshll.u32 %s5, 4
      %s42 = int_to_ptr.hbm [resolvable:$true] %s41
      %s43 = sshll.u32 [#allocation6], 4
      %s44 = int_to_ptr.vmem [resolvable:$true] %s43
      %49 = dma.hbm_to_vmem [thread:$0]  %s42, 2048, %s44, [#allocation7], 256, 256, 16
    $region25: #{_lambda_.1} parent=1 // pred_fallthru
      _
    // Predicated region
    $region26: #{_lambda_.1} parent=1 // pred_check
      _
    $region27: #{_lambda_.1} parent=1 // pred_check_branch
      %51 = sbr.rel (0) target = $region29
    $region28: #{_lambda_.1} parent=1 // pred_region
      %53 = vsyncadd [#allocation7], 0
      %s54 = sshll.u32 %s6, 4
      %s55 = int_to_ptr.hbm [resolvable:$true] %s54
      %s56 = sshll.u32 [#allocation8], 4
      %s57 = int_to_ptr.vmem [resolvable:$true] %s56
      %62 = dma.hbm_to_vmem [thread:$0]  %s55, 1024, %s57, [#allocation7], 128, 128, 8
    $region29: #{_lambda_.1} parent=1 // pred_fallthru
      _
    // Predicated region
    $region30: #{_lambda_.1} parent=1 // pred_check
      _
    $region31: #{_lambda_.1} parent=1 // pred_check_branch
      %64 = sbr.rel (0) target = $region33
    $region32: #{_lambda_.1} parent=1 // pred_region
      _
    $region33: #{_lambda_.1} parent=1 // pred_fallthru
      _
    // Predicated region
    $region34: #{_lambda_.1} parent=1 // pred_check
      _
    $region35: #{_lambda_.1} parent=1 // pred_check_branch
      %66 = sbr.rel (0) target = $region37
    $region36: #{_lambda_.1} parent=1 // pred_region
      %68 = dma.done [#allocation4], 3328
    $region37: #{_lambda_.1} parent=1 // pred_fallthru
      _
    // Predicated region
    $region38: #{_lambda_.1} parent=1 // pred_check
      _
    $region39: #{_lambda_.1} parent=1 // pred_check_branch
      %70 = sbr.rel (0) target = $region41
    $region40: #{_lambda_.1} parent=1 // pred_region
      %72 = dma.done [#allocation7], 2048
    $region41: #{_lambda_.1} parent=1 // pred_fallthru
      _
    // Predicated region
    $region42: #{_lambda_.1} parent=1 // pred_check
      _
    $region43: #{_lambda_.1} parent=1 // pred_check_branch
      %74 = sbr.rel (0) target = $region45
    $region44: #{_lambda_.1} parent=1 // pred_region
      %76 = dma.done [#allocation7], 1024
    $region45: #{_lambda_.1} parent=1 // pred_fallthru
      _
    %v77 = vlaneseq
    %v78 = vand.u32 %v77, 127
    %v79 = vld [vmem:[%s0] sm:$0xff]
    %v80 = vld [vmem:[%s0 + $0x8] sm:$0xff]
    %81 = vset.pattern.permute.xlu0 0
    %82 = vperm.xlu0 %81, %v79
    %v83 = vpop.permute.xlu0 %82
    %84 = vset.pattern.permute.xlu0 0
    %85 = vperm.xlu0 %84, %v80
    %v86 = vpop.permute.xlu0 %85
    %vm87 = vcmp.eq.s32.totalorder %v78, %v83
    %vm88 = vcmp.eq.s32.totalorder %v78, %v86
    %v89 = vld [vmem:[%s1] sm:$0xff]
    %v90 = vld [vmem:[%s1 + $0x8] sm:$0xff]
    %v91 = vadd.s32 %v89, 50
    %v92 = vadd.s32 %v90, 50
    %93 = vset.pattern.permute.xlu0 0
    %94 = vperm.xlu0 %93, %v91
    %v95 = vpop.permute.xlu0 %94
    %96 = vset.pattern.permute.xlu0 0
    %97 = vperm.xlu0 %96, %v92
    %v98 = vpop.permute.xlu0 %97
    %vm99 = vcmp.eq.s32.totalorder %v78, %v95
    %vm100 = vcmp.eq.s32.totalorder %v78, %v98
    %vm101 = vmor %vm87, %vm99
    %vm102 = vmor %vm88, %vm100
    %vm103 = vcmp.eq.s32.totalorder %v78, 100
    %vm104 = vmor %vm101, %vm103
    %vm105 = vmor %vm102, %vm103
    %v106 = vsel %vm104, 1.0, 0.0
    %v107 = vsel %vm105, 1.0, 0.0
    %v108 = vld [vmem:[#allocation3] sm:$0xff]
    %v109 = vld [vmem:[#allocation3 + $0x8] sm:$0xff]
    %v110 = vld [vmem:[#allocation3 + $0x10] sm:$0xff]
    %v111 = vld [vmem:[#allocation3 + $0x18] sm:$0xff]
    %v112 = vld [vmem:[#allocation3 + $0x20] sm:$0xff]
    %v113 = vld [vmem:[#allocation3 + $0x28] sm:$0xff]
    %v114 = vld [vmem:[#allocation3 + $0x30] sm:$0xff]
    %v115 = vld [vmem:[#allocation3 + $0x38] sm:$0xff]
    %v116 = vld [vmem:[#allocation3 + $0x40] sm:$0xff]
    %v117 = vld [vmem:[#allocation3 + $0x48] sm:$0xff]
    %v118 = vld [vmem:[#allocation3 + $0x50] sm:$0xff]
    %v119 = vld [vmem:[#allocation3 + $0x58] sm:$0xff]
    %v120 = vld [vmem:[#allocation3 + $0x60] sm:$0xff]
    %v121 = vld [vmem:[#allocation3 + $0x68] sm:$0xff]
    %v122 = vld [vmem:[#allocation3 + $0x70] sm:$0xff]
    %v123 = vld [vmem:[#allocation3 + $0x78] sm:$0xff]
    %v124 = vld [vmem:[#allocation3 + $0x80] sm:$0xff]
    %v125 = vld [vmem:[#allocation3 + $0x88] sm:$0xff]
    %v126 = vld [vmem:[#allocation3 + $0x90] sm:$0xff]
    %v127 = vld [vmem:[#allocation3 + $0x98] sm:$0xff]
    %v128 = vld [vmem:[#allocation3 + $0xa0] sm:$0xff]
    %v129 = vld [vmem:[#allocation3 + $0xa8] sm:$0xff]
    %v130 = vld [vmem:[#allocation3 + $0xb0] sm:$0xff]
    %v131 = vld [vmem:[#allocation3 + $0xb8] sm:$0xff]
    %v132 = vld [vmem:[#allocation3 + $0xc0] sm:$0x1f]
    %v133 = vld [vmem:[#allocation3 + $0xc8] sm:$0x1f]
    %vm134 = vcmask 826368
    %v136 = vsel %vm134, %v106, 0
    %v139 = vsel %vm134, %v107, 0
    %vm141 = vcmask 1044480
    %v143 = vsel %vm141, %v132, 0
    %v146 = vsel %vm141, %v133, 0
    %148 = vmatpush.msra.mxu0 0.0
    %149 = vmatpush.msra.mxu0 0.0
    %150 = vmatpush.msra.mxu0 0.0
    %151 = vmatpush.msra.mxu0 %v143
    %152 = vmatpush.msra.mxu0 %v130
    %153 = vmatpush.msra.mxu0 %v128
    %154 = vmatpush.msra.mxu0 %v126
    %155 = vmatpush.msra.mxu0 %v124
    %156 = vmatpush.msra.mxu0 %v122
    %157 = vmatpush.msra.mxu0 %v120
    %158 = vmatpush.msra.mxu0 %v118
    %159 = vmatpush.msra.mxu0 %v116
    %160 = vmatpush.msra.mxu0 %v114
    %161 = vmatpush.msra.mxu0 %v112
    %162 = vmatpush.msra.mxu0 %v110
    %163 = vmatpush.msra.mxu0 %v108
    %164 = vmatmul.f32.gmra.mxu0 %v136
    %v165 = vpop.f32.mrf.mxu0
    %v166 = vadd.f32 0.0, %v165
    %167 = vmatmul.f32.gmra.mxu0 %v139
    %v168 = vpop.f32.mrf.mxu0
    %v169 = vadd.f32 0.0, %v168
    %170 = vdwg.mxu0
    %171 = vmatpush.msra.mxu0 0.0
    %172 = vmatpush.msra.mxu0 0.0
    %173 = vmatpush.msra.mxu0 0.0
    %174 = vmatpush.msra.mxu0 %v146
    %175 = vmatpush.msra.mxu0 %v131
    %176 = vmatpush.msra.mxu0 %v129
    %177 = vmatpush.msra.mxu0 %v127
    %178 = vmatpush.msra.mxu0 %v125
    %179 = vmatpush.msra.mxu0 %v123
    %180 = vmatpush.msra.mxu0 %v121
    %181 = vmatpush.msra.mxu0 %v119
    %182 = vmatpush.msra.mxu0 %v117
    %183 = vmatpush.msra.mxu0 %v115
    %184 = vmatpush.msra.mxu0 %v113
    %185 = vmatpush.msra.mxu0 %v111
    %186 = vmatpush.msra.mxu0 %v109
    %187 = vmatmul.f32.gmra.mxu0 %v136
    %v188 = vpop.f32.mrf.mxu0
    %v189 = vadd.f32 0.0, %v188
    %190 = vmatmul.f32.gmra.mxu0 %v139
    %v191 = vpop.f32.mrf.mxu0
    %v192 = vadd.f32 0.0, %v191
    %193 = vdwg.mxu0
    %194 = vst [vmem:[#allocation2] sm:$0xff] %v166
    %195 = vst [vmem:[#allocation2 + $0x8] sm:$0xff] %v189
    %196 = vst [vmem:[#allocation2 + $0x10] sm:$0xff] %v169
    %197 = vst [vmem:[#allocation2 + $0x18] sm:$0xff] %v192
    %v198 = vld [vmem:[%s2] sm:$0x3]
    %s199 = scalar_lea.vmem %s2, 2
    %v200 = vld [vmem:[%s199] sm:$0x3]
    %202 = vrot.lane.b32.xlu0 %v200, 32
    %v203 = vpop.permute.xlu0 %202
    %vm205 = vcmask 261120
    %v206 = vsel %vm205, %v198, %v203
    %v207 = vld [vmem:[%s3] sm:$0x3]
    %s208 = scalar_lea.vmem %s3, 2
    %v209 = vld [vmem:[%s208] sm:$0x3]
    %211 = vrot.lane.b32.xlu0 %v209, 32
    %v212 = vpop.permute.xlu0 %211
    %v214 = vsel %vm205, %v207, %v212
    %v215 = vld [vmem:[#allocation6] sm:$0xff]
    %v216 = vld [vmem:[#allocation6 + $0x8] sm:$0xff]
    %v217 = vld [vmem:[#allocation6 + $0x10] sm:$0xff]
    %v218 = vld [vmem:[#allocation6 + $0x18] sm:$0xff]
    %v219 = vld [vmem:[#allocation6 + $0x20] sm:$0xff]
    %v220 = vld [vmem:[#allocation6 + $0x28] sm:$0xff]
    %v221 = vld [vmem:[#allocation6 + $0x30] sm:$0xff]
    %v222 = vld [vmem:[#allocation6 + $0x38] sm:$0xff]
    %v223 = vld [vmem:[#allocation6 + $0x40] sm:$0xff]
    %v224 = vld [vmem:[#allocation6 + $0x48] sm:$0xff]
    %v225 = vld [vmem:[#allocation6 + $0x50] sm:$0xff]
    %v226 = vld [vmem:[#allocation6 + $0x58] sm:$0xff]
    %v227 = vld [vmem:[#allocation6 + $0x60] sm:$0xff]
    %v228 = vld [vmem:[#allocation6 + $0x68] sm:$0xff]
    %v229 = vld [vmem:[#allocation6 + $0x70] sm:$0xff]
    %v230 = vld [vmem:[#allocation6 + $0x78] sm:$0xff]
    %v231 = vld [vmem:[#allocation2] sm:$0x3]
    %v232 = vld [vmem:[#allocation2 + $0x8] sm:$0x3]
    %vm233 = vcmask 523264
    %v235 = vsel %vm233, %v206, 0
    %237 = vmatpush.msra.mxu0 0.0
    %238 = vmatpush.msra.mxu0 0.0
    %239 = vmatpush.msra.mxu0 0.0
    %240 = vmatpush.msra.mxu0 0.0
    %241 = vmatpush.msra.mxu0 0.0
    %242 = vmatpush.msra.mxu0 0.0
    %243 = vmatpush.msra.mxu0 0.0
    %244 = vmatpush.msra.mxu0 0.0
    %245 = vmatpush.msra.mxu0 %v229
    %246 = vmatpush.msra.mxu0 %v227
    %247 = vmatpush.msra.mxu0 %v225
    %248 = vmatpush.msra.mxu0 %v223
    %249 = vmatpush.msra.mxu0 %v221
    %250 = vmatpush.msra.mxu0 %v219
    %251 = vmatpush.msra.mxu0 %v217
    %252 = vmatpush.msra.mxu0 %v215
    %253 = vmatmul.f32.gmra.mxu0 %v235
    %v254 = vpop.f32.mrf.mxu0
    %v255 = vadd.f32 %v231, %v254
    %256 = vdwg.mxu0
    %257 = vmatpush.msra.mxu0 0.0
    %258 = vmatpush.msra.mxu0 0.0
    %259 = vmatpush.msra.mxu0 0.0
    %260 = vmatpush.msra.mxu0 0.0
    %261 = vmatpush.msra.mxu0 0.0
    %262 = vmatpush.msra.mxu0 0.0
    %263 = vmatpush.msra.mxu0 0.0
    %264 = vmatpush.msra.mxu0 0.0
    %265 = vmatpush.msra.mxu0 %v230
    %266 = vmatpush.msra.mxu0 %v228
    %267 = vmatpush.msra.mxu0 %v226
    %268 = vmatpush.msra.mxu0 %v224
    %269 = vmatpush.msra.mxu0 %v222
    %270 = vmatpush.msra.mxu0 %v220
    %271 = vmatpush.msra.mxu0 %v218
    %272 = vmatpush.msra.mxu0 %v216
    %273 = vmatmul.f32.gmra.mxu0 %v235
    %v274 = vpop.f32.mrf.mxu0
    %v275 = vadd.f32 %v232, %v274
    %276 = vdwg.mxu0
    %v277 = vxor.u32 %v255, 2147483648
    %v278 = vxor.u32 %v275, 2147483648
    %v279 = vmul.f32 %v277, 1.442695
    %v280 = vpow.pop %v279
    %v281 = vmul.f32 %v278, 1.442695
    %v282 = vpow.pop %v281
    %v283 = vadd.f32 %v280, 1.0
    %v284 = vadd.f32 %v282, 1.0
    %v285 = vrcp.pop %v283
    %v286 = vmul.f32 %v283, %v285
    %v287 = vsub.f32 1.0, %v286
    %v288 = vmul.f32 %v285, %v287
    %v289 = vadd.f32 %v285, %v288
    %vm290 = vweird.f32 %v283
    %vm291 = vweird.f32 %v285
    %vm292 = vmor %vm290, %vm291
    %v293 = vsel %vm292, %v285, %v289
    %v294 = vand.u32 2147483647, %v283
    %vm295 = vcmp.eq.f32.partialorder %v294, 8.507059e+37
    %v296 = vand.u32 %v283, 2147483648
    %v297 = vor.u32 1.1754944e-38, %v296
    %v298 = vsel %vm295, %v297, %v293
    %v299 = vmul.f32 1.0, %v298
    %v300 = vrcp.pop %v284
    %v301 = vmul.f32 %v284, %v300
    %v302 = vsub.f32 1.0, %v301
    %v303 = vmul.f32 %v300, %v302
    %v304 = vadd.f32 %v300, %v303
    %vm305 = vweird.f32 %v284
    %vm306 = vweird.f32 %v300
    %vm307 = vmor %vm305, %vm306
    %v308 = vsel %vm307, %v300, %v304
    %v309 = vand.u32 2147483647, %v284
    %vm310 = vcmp.eq.f32.partialorder %v309, 8.507059e+37
    %v311 = vand.u32 %v284, 2147483648
    %v312 = vor.u32 1.1754944e-38, %v311
    %v313 = vsel %vm310, %v312, %v308
    %v314 = vmul.f32 1.0, %v313
    %v315 = vtanh.pop %v275
    %317 = vrot.lane.b32.xlu0 %v214, 64
    %v318 = vpop.permute.xlu0 %317
    %v320 = vmul.f32 %v299, %v318
    %322 = vrot.lane.b32.xlu0 %v315, 64
    %v323 = vpop.permute.xlu0 %322
    %v325 = vmul.f32 %v299, %v323
    %327 = vrot.lane.b32.xlu0 %v325, 64
    %v328 = vpop.permute.xlu0 %327
    %v330 = vadd.f32 %v320, %v328
    %v331 = vtanh.pop %v330
    %333 = vrot.lane.b32.xlu0 %v331, 64
    %v334 = vpop.permute.xlu0 %333
    %v336 = vmul.f32 %v314, %v334
    %v337 = vld [vmem:[#allocation2] sm:$0xc]
    %v338 = vld [vmem:[#allocation2 + $0x8] sm:$0xc]
    %v341 = vrot.slane %v337, 2
    %v342 = vrot.slane %v338, 2
    %v346 = vsel %vm233, %v336, 0
    %348 = vmatpush.msra.mxu0 0.0
    %349 = vmatpush.msra.mxu0 0.0
    %350 = vmatpush.msra.mxu0 0.0
    %351 = vmatpush.msra.mxu0 0.0
    %352 = vmatpush.msra.mxu0 0.0
    %353 = vmatpush.msra.mxu0 0.0
    %354 = vmatpush.msra.mxu0 0.0
    %355 = vmatpush.msra.mxu0 0.0
    %356 = vmatpush.msra.mxu0 %v229
    %357 = vmatpush.msra.mxu0 %v227
    %358 = vmatpush.msra.mxu0 %v225
    %359 = vmatpush.msra.mxu0 %v223
    %360 = vmatpush.msra.mxu0 %v221
    %361 = vmatpush.msra.mxu0 %v219
    %362 = vmatpush.msra.mxu0 %v217
    %363 = vmatpush.msra.mxu0 %v215
    %364 = vmatmul.f32.gmra.mxu0 %v346
    %v365 = vpop.f32.mrf.mxu0
    %v366 = vadd.f32 %v341, %v365
    %367 = vdwg.mxu0
    %368 = vmatpush.msra.mxu0 0.0
    %369 = vmatpush.msra.mxu0 0.0
    %370 = vmatpush.msra.mxu0 0.0
    %371 = vmatpush.msra.mxu0 0.0
    %372 = vmatpush.msra.mxu0 0.0
    %373 = vmatpush.msra.mxu0 0.0
    %374 = vmatpush.msra.mxu0 0.0
    %375 = vmatpush.msra.mxu0 0.0
    %376 = vmatpush.msra.mxu0 %v230
    %377 = vmatpush.msra.mxu0 %v228
    %378 = vmatpush.msra.mxu0 %v226
    %379 = vmatpush.msra.mxu0 %v224
    %380 = vmatpush.msra.mxu0 %v222
    %381 = vmatpush.msra.mxu0 %v220
    %382 = vmatpush.msra.mxu0 %v218
    %383 = vmatpush.msra.mxu0 %v216
    %384 = vmatmul.f32.gmra.mxu0 %v346
    %v385 = vpop.f32.mrf.mxu0
    %v386 = vadd.f32 %v342, %v385
    %387 = vdwg.mxu0
    %v388 = vxor.u32 %v366, 2147483648
    %v389 = vxor.u32 %v386, 2147483648
    %v390 = vmul.f32 %v388, 1.442695
    %v391 = vpow.pop %v390
    %v392 = vmul.f32 %v389, 1.442695
    %v393 = vpow.pop %v392
    %v394 = vadd.f32 %v391, 1.0
    %v395 = vadd.f32 %v393, 1.0
    %v396 = vrcp.pop %v394
    %v397 = vmul.f32 %v394, %v396
    %v398 = vsub.f32 1.0, %v397
    %v399 = vmul.f32 %v396, %v398
    %v400 = vadd.f32 %v396, %v399
    %vm401 = vweird.f32 %v394
    %vm402 = vweird.f32 %v396
    %vm403 = vmor %vm401, %vm402
    %v404 = vsel %vm403, %v396, %v400
    %v405 = vand.u32 2147483647, %v394
    %vm406 = vcmp.eq.f32.partialorder %v405, 8.507059e+37
    %v407 = vand.u32 %v394, 2147483648
    %v408 = vor.u32 1.1754944e-38, %v407
    %v409 = vsel %vm406, %v408, %v404
    %v410 = vmul.f32 1.0, %v409
    %v411 = vrcp.pop %v395
    %v412 = vmul.f32 %v395, %v411
    %v413 = vsub.f32 1.0, %v412
    %v414 = vmul.f32 %v411, %v413
    %v415 = vadd.f32 %v411, %v414
    %vm416 = vweird.f32 %v395
    %vm417 = vweird.f32 %v411
    %vm418 = vmor %vm416, %vm417
    %v419 = vsel %vm418, %v411, %v415
    %v420 = vand.u32 2147483647, %v395
    %vm421 = vcmp.eq.f32.partialorder %v420, 8.507059e+37
    %v422 = vand.u32 %v395, 2147483648
    %v423 = vor.u32 1.1754944e-38, %v422
    %v424 = vsel %vm421, %v423, %v419
    %v425 = vmul.f32 1.0, %v424
    %v426 = vtanh.pop %v386
    %v427 = vmul.f32 %v410, %v330
    %429 = vrot.lane.b32.xlu0 %v426, 64
    %v430 = vpop.permute.xlu0 %429
    %v432 = vmul.f32 %v410, %v430
    %434 = vrot.lane.b32.xlu0 %v432, 64
    %v435 = vpop.permute.xlu0 %434
    %v437 = vadd.f32 %v427, %v435
    %v438 = vtanh.pop %v437
    %440 = vrot.lane.b32.xlu0 %v438, 64
    %v441 = vpop.permute.xlu0 %440
    %v443 = vmul.f32 %v425, %v441
    %v444 = vld [vmem:[#allocation2] sm:$0x30]
    %v445 = vld [vmem:[#allocation2 + $0x8] sm:$0x30]
    %v448 = vrot.slane %v444, 4
    %v449 = vrot.slane %v445, 4
    %v453 = vsel %vm233, %v443, 0
    %455 = vmatpush.msra.mxu0 0.0
    %456 = vmatpush.msra.mxu0 0.0
    %457 = vmatpush.msra.mxu0 0.0
    %458 = vmatpush.msra.mxu0 0.0
    %459 = vmatpush.msra.mxu0 0.0
    %460 = vmatpush.msra.mxu0 0.0
    %461 = vmatpush.msra.mxu0 0.0
    %462 = vmatpush.msra.mxu0 0.0
    %463 = vmatpush.msra.mxu0 %v229
    %464 = vmatpush.msra.mxu0 %v227
    %465 = vmatpush.msra.mxu0 %v225
    %466 = vmatpush.msra.mxu0 %v223
    %467 = vmatpush.msra.mxu0 %v221
    %468 = vmatpush.msra.mxu0 %v219
    %469 = vmatpush.msra.mxu0 %v217
    %470 = vmatpush.msra.mxu0 %v215
    %471 = vmatmul.f32.gmra.mxu0 %v453
    %v472 = vpop.f32.mrf.mxu0
    %v473 = vadd.f32 %v448, %v472
    %474 = vdwg.mxu0
    %475 = vmatpush.msra.mxu0 0.0
    %476 = vmatpush.msra.mxu0 0.0
    %477 = vmatpush.msra.mxu0 0.0
    %478 = vmatpush.msra.mxu0 0.0
    %479 = vmatpush.msra.mxu0 0.0
    %480 = vmatpush.msra.mxu0 0.0
    %481 = vmatpush.msra.mxu0 0.0
    %482 = vmatpush.msra.mxu0 0.0
    %483 = vmatpush.msra.mxu0 %v230
    %484 = vmatpush.msra.mxu0 %v228
    %485 = vmatpush.msra.mxu0 %v226
    %486 = vmatpush.msra.mxu0 %v224
    %487 = vmatpush.msra.mxu0 %v222
    %488 = vmatpush.msra.mxu0 %v220
    %489 = vmatpush.msra.mxu0 %v218
    %490 = vmatpush.msra.mxu0 %v216
    %491 = vmatmul.f32.gmra.mxu0 %v453
    %v492 = vpop.f32.mrf.mxu0
    %v493 = vadd.f32 %v449, %v492
    %494 = vdwg.mxu0
    %v495 = vxor.u32 %v473, 2147483648
    %v496 = vxor.u32 %v493, 2147483648
    %v497 = vmul.f32 %v495, 1.442695
    %v498 = vpow.pop %v497
    %v499 = vmul.f32 %v496, 1.442695
    %v500 = vpow.pop %v499
    %v501 = vadd.f32 %v498, 1.0
    %v502 = vadd.f32 %v500, 1.0
    %v503 = vrcp.pop %v501
    %v504 = vmul.f32 %v501, %v503
    %v505 = vsub.f32 1.0, %v504
    %v506 = vmul.f32 %v503, %v505
    %v507 = vadd.f32 %v503, %v506
    %vm508 = vweird.f32 %v501
    %vm509 = vweird.f32 %v503
    %vm510 = vmor %vm508, %vm509
    %v511 = vsel %vm510, %v503, %v507
    %v512 = vand.u32 2147483647, %v501
    %vm513 = vcmp.eq.f32.partialorder %v512, 8.507059e+37
    %v514 = vand.u32 %v501, 2147483648
    %v515 = vor.u32 1.1754944e-38, %v514
    %v516 = vsel %vm513, %v515, %v511
    %v517 = vmul.f32 1.0, %v516
    %v518 = vrcp.pop %v502
    %v519 = vmul.f32 %v502, %v518
    %v520 = vsub.f32 1.0, %v519
    %v521 = vmul.f32 %v518, %v520
    %v522 = vadd.f32 %v518, %v521
    %vm523 = vweird.f32 %v502
    %vm524 = vweird.f32 %v518
    %vm525 = vmor %vm523, %vm524
    %v526 = vsel %vm525, %v518, %v522
    %v527 = vand.u32 2147483647, %v502
    %vm528 = vcmp.eq.f32.partialorder %v527, 8.507059e+37
    %v529 = vand.u32 %v502, 2147483648
    %v530 = vor.u32 1.1754944e-38, %v529
    %v531 = vsel %vm528, %v530, %v526
    %v532 = vmul.f32 1.0, %v531
    %v533 = vtanh.pop %v493
    %v534 = vmul.f32 %v517, %v437
    %536 = vrot.lane.b32.xlu0 %v533, 64
    %v537 = vpop.permute.xlu0 %536
    %v539 = vmul.f32 %v517, %v537
    %541 = vrot.lane.b32.xlu0 %v539, 64
    %v542 = vpop.permute.xlu0 %541
    %v544 = vadd.f32 %v534, %v542
    %v545 = vtanh.pop %v544
    %547 = vrot.lane.b32.xlu0 %v545, 64
    %v548 = vpop.permute.xlu0 %547
    %v550 = vmul.f32 %v532, %v548
    %v551 = vld [vmem:[#allocation2] sm:$0xc0]
    %v552 = vld [vmem:[#allocation2 + $0x8] sm:$0xc0]
    %v555 = vrot.slane %v551, 6
    %v556 = vrot.slane %v552, 6
    %v560 = vsel %vm233, %v550, 0
    %562 = vmatpush.msra.mxu0 0.0
    %563 = vmatpush.msra.mxu0 0.0
    %564 = vmatpush.msra.mxu0 0.0
    %565 = vmatpush.msra.mxu0 0.0
    %566 = vmatpush.msra.mxu0 0.0
    %567 = vmatpush.msra.mxu0 0.0
    %568 = vmatpush.msra.mxu0 0.0
    %569 = vmatpush.msra.mxu0 0.0
    %570 = vmatpush.msra.mxu0 %v229
    %571 = vmatpush.msra.mxu0 %v227
    %572 = vmatpush.msra.mxu0 %v225
    %573 = vmatpush.msra.mxu0 %v223
    %574 = vmatpush.msra.mxu0 %v221
    %575 = vmatpush.msra.mxu0 %v219
    %576 = vmatpush.msra.mxu0 %v217
    %577 = vmatpush.msra.mxu0 %v215
    %578 = vmatmul.f32.gmra.mxu0 %v560
    %v579 = vpop.f32.mrf.mxu0
    %v580 = vadd.f32 %v555, %v579
    %581 = vdwg.mxu0
    %582 = vmatpush.msra.mxu0 0.0
    %583 = vmatpush.msra.mxu0 0.0
    %584 = vmatpush.msra.mxu0 0.0
    %585 = vmatpush.msra.mxu0 0.0
    %586 = vmatpush.msra.mxu0 0.0
    %587 = vmatpush.msra.mxu0 0.0
    %588 = vmatpush.msra.mxu0 0.0
    %589 = vmatpush.msra.mxu0 0.0
    %590 = vmatpush.msra.mxu0 %v230
    %591 = vmatpush.msra.mxu0 %v228
    %592 = vmatpush.msra.mxu0 %v226
    %593 = vmatpush.msra.mxu0 %v224
    %594 = vmatpush.msra.mxu0 %v222
    %595 = vmatpush.msra.mxu0 %v220
    %596 = vmatpush.msra.mxu0 %v218
    %597 = vmatpush.msra.mxu0 %v216
    %598 = vmatmul.f32.gmra.mxu0 %v560
    %v599 = vpop.f32.mrf.mxu0
    %v600 = vadd.f32 %v556, %v599
    %601 = vdwg.mxu0
    %v602 = vxor.u32 %v580, 2147483648
    %v603 = vxor.u32 %v600, 2147483648
    %v604 = vmul.f32 %v602, 1.442695
    %v605 = vpow.pop %v604
    %v606 = vmul.f32 %v603, 1.442695
    %v607 = vpow.pop %v606
    %v608 = vadd.f32 %v605, 1.0
    %v609 = vadd.f32 %v607, 1.0
    %v610 = vrcp.pop %v608
    %v611 = vmul.f32 %v608, %v610
    %v612 = vsub.f32 1.0, %v611
    %v613 = vmul.f32 %v610, %v612
    %v614 = vadd.f32 %v610, %v613
    %vm615 = vweird.f32 %v608
    %vm616 = vweird.f32 %v610
    %vm617 = vmor %vm615, %vm616
    %v618 = vsel %vm617, %v610, %v614
    %v619 = vand.u32 2147483647, %v608
    %vm620 = vcmp.eq.f32.partialorder %v619, 8.507059e+37
    %v621 = vand.u32 %v608, 2147483648
    %v622 = vor.u32 1.1754944e-38, %v621
    %v623 = vsel %vm620, %v622, %v618
    %v624 = vmul.f32 1.0, %v623
    %v625 = vrcp.pop %v609
    %v626 = vmul.f32 %v609, %v625
    %v627 = vsub.f32 1.0, %v626
    %v628 = vmul.f32 %v625, %v627
    %v629 = vadd.f32 %v625, %v628
    %vm630 = vweird.f32 %v609
    %vm631 = vweird.f32 %v625
    %vm632 = vmor %vm630, %vm631
    %v633 = vsel %vm632, %v625, %v629
    %v634 = vand.u32 2147483647, %v609
    %vm635 = vcmp.eq.f32.partialorder %v634, 8.507059e+37
    %v636 = vand.u32 %v609, 2147483648
    %v637 = vor.u32 1.1754944e-38, %v636
    %v638 = vsel %vm635, %v637, %v633
    %v639 = vmul.f32 1.0, %v638
    %v640 = vtanh.pop %v600
    %v641 = vmul.f32 %v624, %v544
    %643 = vrot.lane.b32.xlu0 %v640, 64
    %v644 = vpop.permute.xlu0 %643
    %v646 = vmul.f32 %v624, %v644
    %648 = vrot.lane.b32.xlu0 %v646, 64
    %v649 = vpop.permute.xlu0 %648
    %v651 = vadd.f32 %v641, %v649
    %v652 = vtanh.pop %v651
    %654 = vrot.lane.b32.xlu0 %v652, 64
    %v655 = vpop.permute.xlu0 %654
    %v657 = vmul.f32 %v639, %v655
    %v658 = vld [vmem:[#allocation2 + $0x10] sm:$0x3]
    %v659 = vld [vmem:[#allocation2 + $0x18] sm:$0x3]
    %v661 = vsel %vm233, %v657, 0
    %663 = vmatpush.msra.mxu0 0.0
    %664 = vmatpush.msra.mxu0 0.0
    %665 = vmatpush.msra.mxu0 0.0
    %666 = vmatpush.msra.mxu0 0.0
    %667 = vmatpush.msra.mxu0 0.0
    %668 = vmatpush.msra.mxu0 0.0
    %669 = vmatpush.msra.mxu0 0.0
    %670 = vmatpush.msra.mxu0 0.0
    %671 = vmatpush.msra.mxu0 %v229
    %672 = vmatpush.msra.mxu0 %v227
    %673 = vmatpush.msra.mxu0 %v225
    %674 = vmatpush.msra.mxu0 %v223
    %675 = vmatpush.msra.mxu0 %v221
    %676 = vmatpush.msra.mxu0 %v219
    %677 = vmatpush.msra.mxu0 %v217
    %678 = vmatpush.msra.mxu0 %v215
    %679 = vmatmul.f32.gmra.mxu0 %v661
    %v680 = vpop.f32.mrf.mxu0
    %v681 = vadd.f32 %v658, %v680
    %682 = vdwg.mxu0
    %683 = vmatpush.msra.mxu0 0.0
    %684 = vmatpush.msra.mxu0 0.0
    %685 = vmatpush.msra.mxu0 0.0
    %686 = vmatpush.msra.mxu0 0.0
    %687 = vmatpush.msra.mxu0 0.0
    %688 = vmatpush.msra.mxu0 0.0
    %689 = vmatpush.msra.mxu0 0.0
    %690 = vmatpush.msra.mxu0 0.0
    %691 = vmatpush.msra.mxu0 %v230
    %692 = vmatpush.msra.mxu0 %v228
    %693 = vmatpush.msra.mxu0 %v226
    %694 = vmatpush.msra.mxu0 %v224
    %695 = vmatpush.msra.mxu0 %v222
    %696 = vmatpush.msra.mxu0 %v220
    %697 = vmatpush.msra.mxu0 %v218
    %698 = vmatpush.msra.mxu0 %v216
    %699 = vmatmul.f32.gmra.mxu0 %v661
    %v700 = vpop.f32.mrf.mxu0
    %v701 = vadd.f32 %v659, %v700
    %702 = vdwg.mxu0
    %v703 = vxor.u32 %v681, 2147483648
    %v704 = vxor.u32 %v701, 2147483648
    %v705 = vmul.f32 %v703, 1.442695
    %v706 = vpow.pop %v705
    %v707 = vmul.f32 %v704, 1.442695
    %v708 = vpow.pop %v707
    %v709 = vadd.f32 %v706, 1.0
    %v710 = vadd.f32 %v708, 1.0
    %v711 = vrcp.pop %v709
    %v712 = vmul.f32 %v709, %v711
    %v713 = vsub.f32 1.0, %v712
    %v714 = vmul.f32 %v711, %v713
    %v715 = vadd.f32 %v711, %v714
    %vm716 = vweird.f32 %v709
    %vm717 = vweird.f32 %v711
    %vm718 = vmor %vm716, %vm717
    %v719 = vsel %vm718, %v711, %v715
    %v720 = vand.u32 2147483647, %v709
    %vm721 = vcmp.eq.f32.partialorder %v720, 8.507059e+37
    %v722 = vand.u32 %v709, 2147483648
    %v723 = vor.u32 1.1754944e-38, %v722
    %v724 = vsel %vm721, %v723, %v719
    %v725 = vmul.f32 1.0, %v724
    %v726 = vrcp.pop %v710
    %v727 = vmul.f32 %v710, %v726
    %v728 = vsub.f32 1.0, %v727
    %v729 = vmul.f32 %v726, %v728
    %v730 = vadd.f32 %v726, %v729
    %vm731 = vweird.f32 %v710
    %vm732 = vweird.f32 %v726
    %vm733 = vmor %vm731, %vm732
    %v734 = vsel %vm733, %v726, %v730
    %v735 = vand.u32 2147483647, %v710
    %vm736 = vcmp.eq.f32.partialorder %v735, 8.507059e+37
    %v737 = vand.u32 %v710, 2147483648
    %v738 = vor.u32 1.1754944e-38, %v737
    %v739 = vsel %vm736, %v738, %v734
    %v740 = vmul.f32 1.0, %v739
    %v741 = vtanh.pop %v701
    %v742 = vmul.f32 %v725, %v651
    %744 = vrot.lane.b32.xlu0 %v741, 64
    %v745 = vpop.permute.xlu0 %744
    %v747 = vmul.f32 %v725, %v745
    %749 = vrot.lane.b32.xlu0 %v747, 64
    %v750 = vpop.permute.xlu0 %749
    %v752 = vadd.f32 %v742, %v750
    %v753 = vtanh.pop %v752
    %755 = vrot.lane.b32.xlu0 %v753, 64
    %v756 = vpop.permute.xlu0 %755
    %v758 = vmul.f32 %v740, %v756
    %v759 = vld [vmem:[#allocation2 + $0x10] sm:$0xc]
    %v760 = vld [vmem:[#allocation2 + $0x18] sm:$0xc]
    %v763 = vrot.slane %v759, 2
    %v764 = vrot.slane %v760, 2
    %v768 = vsel %vm233, %v758, 0
    %770 = vmatpush.msra.mxu0 0.0
    %771 = vmatpush.msra.mxu0 0.0
    %772 = vmatpush.msra.mxu0 0.0
    %773 = vmatpush.msra.mxu0 0.0
    %774 = vmatpush.msra.mxu0 0.0
    %775 = vmatpush.msra.mxu0 0.0
    %776 = vmatpush.msra.mxu0 0.0
    %777 = vmatpush.msra.mxu0 0.0
    %778 = vmatpush.msra.mxu0 %v229
    %779 = vmatpush.msra.mxu0 %v227
    %780 = vmatpush.msra.mxu0 %v225
    %781 = vmatpush.msra.mxu0 %v223
    %782 = vmatpush.msra.mxu0 %v221
    %783 = vmatpush.msra.mxu0 %v219
    %784 = vmatpush.msra.mxu0 %v217
    %785 = vmatpush.msra.mxu0 %v215
    %786 = vmatmul.f32.gmra.mxu0 %v768
    %v787 = vpop.f32.mrf.mxu0
    %v788 = vadd.f32 %v763, %v787
    %789 = vdwg.mxu0
    %790 = vmatpush.msra.mxu0 0.0
    %791 = vmatpush.msra.mxu0 0.0
    %792 = vmatpush.msra.mxu0 0.0
    %793 = vmatpush.msra.mxu0 0.0
    %794 = vmatpush.msra.mxu0 0.0
    %795 = vmatpush.msra.mxu0 0.0
    %796 = vmatpush.msra.mxu0 0.0
    %797 = vmatpush.msra.mxu0 0.0
    %798 = vmatpush.msra.mxu0 %v230
    %799 = vmatpush.msra.mxu0 %v228
    %800 = vmatpush.msra.mxu0 %v226
    %801 = vmatpush.msra.mxu0 %v224
    %802 = vmatpush.msra.mxu0 %v222
    %803 = vmatpush.msra.mxu0 %v220
    %804 = vmatpush.msra.mxu0 %v218
    %805 = vmatpush.msra.mxu0 %v216
    %806 = vmatmul.f32.gmra.mxu0 %v768
    %v807 = vpop.f32.mrf.mxu0
    %v808 = vadd.f32 %v764, %v807
    %809 = vdwg.mxu0
    %v810 = vxor.u32 %v788, 2147483648
    %v811 = vxor.u32 %v808, 2147483648
    %v812 = vmul.f32 %v810, 1.442695
    %v813 = vpow.pop %v812
    %v814 = vmul.f32 %v811, 1.442695
    %v815 = vpow.pop %v814
    %v816 = vadd.f32 %v813, 1.0
    %v817 = vadd.f32 %v815, 1.0
    %v818 = vrcp.pop %v816
    %v819 = vmul.f32 %v816, %v818
    %v820 = vsub.f32 1.0, %v819
    %v821 = vmul.f32 %v818, %v820
    %v822 = vadd.f32 %v818, %v821
    %vm823 = vweird.f32 %v816
    %vm824 = vweird.f32 %v818
    %vm825 = vmor %vm823, %vm824
    %v826 = vsel %vm825, %v818, %v822
    %v827 = vand.u32 2147483647, %v816
    %vm828 = vcmp.eq.f32.partialorder %v827, 8.507059e+37
    %v829 = vand.u32 %v816, 2147483648
    %v830 = vor.u32 1.1754944e-38, %v829
    %v831 = vsel %vm828, %v830, %v826
    %v832 = vmul.f32 1.0, %v831
    %v833 = vrcp.pop %v817
    %v834 = vmul.f32 %v817, %v833
    %v835 = vsub.f32 1.0, %v834
    %v836 = vmul.f32 %v833, %v835
    %v837 = vadd.f32 %v833, %v836
    %vm838 = vweird.f32 %v817
    %vm839 = vweird.f32 %v833
    %vm840 = vmor %vm838, %vm839
    %v841 = vsel %vm840, %v833, %v837
    %v842 = vand.u32 2147483647, %v817
    %vm843 = vcmp.eq.f32.partialorder %v842, 8.507059e+37
    %v844 = vand.u32 %v817, 2147483648
    %v845 = vor.u32 1.1754944e-38, %v844
    %v846 = vsel %vm843, %v845, %v841
    %v847 = vmul.f32 1.0, %v846
    %v848 = vtanh.pop %v808
    %v849 = vmul.f32 %v832, %v752
    %851 = vrot.lane.b32.xlu0 %v848, 64
    %v852 = vpop.permute.xlu0 %851
    %v854 = vmul.f32 %v832, %v852
    %856 = vrot.lane.b32.xlu0 %v854, 64
    %v857 = vpop.permute.xlu0 %856
    %v859 = vadd.f32 %v849, %v857
    %v860 = vtanh.pop %v859
    %862 = vrot.lane.b32.xlu0 %v860, 64
    %v863 = vpop.permute.xlu0 %862
    %v865 = vmul.f32 %v847, %v863
    %v866 = vld [vmem:[#allocation2 + $0x10] sm:$0x30]
    %v867 = vld [vmem:[#allocation2 + $0x18] sm:$0x30]
    %v870 = vrot.slane %v866, 4
    %v871 = vrot.slane %v867, 4
    %v875 = vsel %vm233, %v865, 0
    %877 = vmatpush.msra.mxu0 0.0
    %878 = vmatpush.msra.mxu0 0.0
    %879 = vmatpush.msra.mxu0 0.0
    %880 = vmatpush.msra.mxu0 0.0
    %881 = vmatpush.msra.mxu0 0.0
    %882 = vmatpush.msra.mxu0 0.0
    %883 = vmatpush.msra.mxu0 0.0
    %884 = vmatpush.msra.mxu0 0.0
    %885 = vmatpush.msra.mxu0 %v229
    %886 = vmatpush.msra.mxu0 %v227
    %887 = vmatpush.msra.mxu0 %v225
    %888 = vmatpush.msra.mxu0 %v223
    %889 = vmatpush.msra.mxu0 %v221
    %890 = vmatpush.msra.mxu0 %v219
    %891 = vmatpush.msra.mxu0 %v217
    %892 = vmatpush.msra.mxu0 %v215
    %893 = vmatmul.f32.gmra.mxu0 %v875
    %v894 = vpop.f32.mrf.mxu0
    %v895 = vadd.f32 %v870, %v894
    %896 = vdwg.mxu0
    %897 = vmatpush.msra.mxu0 0.0
    %898 = vmatpush.msra.mxu0 0.0
    %899 = vmatpush.msra.mxu0 0.0
    %900 = vmatpush.msra.mxu0 0.0
    %901 = vmatpush.msra.mxu0 0.0
    %902 = vmatpush.msra.mxu0 0.0
    %903 = vmatpush.msra.mxu0 0.0
    %904 = vmatpush.msra.mxu0 0.0
    %905 = vmatpush.msra.mxu0 %v230
    %906 = vmatpush.msra.mxu0 %v228
    %907 = vmatpush.msra.mxu0 %v226
    %908 = vmatpush.msra.mxu0 %v224
    %909 = vmatpush.msra.mxu0 %v222
    %910 = vmatpush.msra.mxu0 %v220
    %911 = vmatpush.msra.mxu0 %v218
    %912 = vmatpush.msra.mxu0 %v216
    %913 = vmatmul.f32.gmra.mxu0 %v875
    %v914 = vpop.f32.mrf.mxu0
    %v915 = vadd.f32 %v871, %v914
    %916 = vdwg.mxu0
    %v917 = vxor.u32 %v895, 2147483648
    %v918 = vxor.u32 %v915, 2147483648
    %v919 = vmul.f32 %v917, 1.442695
    %v920 = vpow.pop %v919
    %v921 = vmul.f32 %v918, 1.442695
    %v922 = vpow.pop %v921
    %v923 = vadd.f32 %v920, 1.0
    %v924 = vadd.f32 %v922, 1.0
    %v925 = vrcp.pop %v923
    %v926 = vmul.f32 %v923, %v925
    %v927 = vsub.f32 1.0, %v926
    %v928 = vmul.f32 %v925, %v927
    %v929 = vadd.f32 %v925, %v928
    %vm930 = vweird.f32 %v923
    %vm931 = vweird.f32 %v925
    %vm932 = vmor %vm930, %vm931
    %v933 = vsel %vm932, %v925, %v929
    %v934 = vand.u32 2147483647, %v923
    %vm935 = vcmp.eq.f32.partialorder %v934, 8.507059e+37
    %v936 = vand.u32 %v923, 2147483648
    %v937 = vor.u32 1.1754944e-38, %v936
    %v938 = vsel %vm935, %v937, %v933
    %v939 = vmul.f32 1.0, %v938
    %v940 = vrcp.pop %v924
    %v941 = vmul.f32 %v924, %v940
    %v942 = vsub.f32 1.0, %v941
    %v943 = vmul.f32 %v940, %v942
    %v944 = vadd.f32 %v940, %v943
    %vm945 = vweird.f32 %v924
    %vm946 = vweird.f32 %v940
    %vm947 = vmor %vm945, %vm946
    %v948 = vsel %vm947, %v940, %v944
    %v949 = vand.u32 2147483647, %v924
    %vm950 = vcmp.eq.f32.partialorder %v949, 8.507059e+37
    %v951 = vand.u32 %v924, 2147483648
    %v952 = vor.u32 1.1754944e-38, %v951
    %v953 = vsel %vm950, %v952, %v948
    %v954 = vmul.f32 1.0, %v953
    %v955 = vtanh.pop %v915
    %v956 = vmul.f32 %v939, %v859
    %958 = vrot.lane.b32.xlu0 %v955, 64
    %v959 = vpop.permute.xlu0 %958
    %v961 = vmul.f32 %v939, %v959
    %963 = vrot.lane.b32.xlu0 %v961, 64
    %v964 = vpop.permute.xlu0 %963
    %v966 = vadd.f32 %v956, %v964
    %v967 = vtanh.pop %v966
    %969 = vrot.lane.b32.xlu0 %v967, 64
    %v970 = vpop.permute.xlu0 %969
    %v972 = vmul.f32 %v954, %v970
    %v973 = vld [vmem:[#allocation2 + $0x10] sm:$0xc0]
    %v974 = vld [vmem:[#allocation2 + $0x18] sm:$0xc0]
    %v977 = vrot.slane %v973, 6
    %v978 = vrot.slane %v974, 6
    %v982 = vsel %vm233, %v972, 0
    %984 = vmatpush.msra.mxu0 0.0
    %985 = vmatpush.msra.mxu0 0.0
    %986 = vmatpush.msra.mxu0 0.0
    %987 = vmatpush.msra.mxu0 0.0
    %988 = vmatpush.msra.mxu0 0.0
    %989 = vmatpush.msra.mxu0 0.0
    %990 = vmatpush.msra.mxu0 0.0
    %991 = vmatpush.msra.mxu0 0.0
    %992 = vmatpush.msra.mxu0 %v229
    %993 = vmatpush.msra.mxu0 %v227
    %994 = vmatpush.msra.mxu0 %v225
    %995 = vmatpush.msra.mxu0 %v223
    %996 = vmatpush.msra.mxu0 %v221
    %997 = vmatpush.msra.mxu0 %v219
    %998 = vmatpush.msra.mxu0 %v217
    %999 = vmatpush.msra.mxu0 %v215
    %1000 = vmatmul.f32.gmra.mxu0 %v982
    %v1001 = vpop.f32.mrf.mxu0
    %v1002 = vadd.f32 %v977, %v1001
    %1003 = vdwg.mxu0
    %1004 = vmatpush.msra.mxu0 0.0
    %1005 = vmatpush.msra.mxu0 0.0
    %1006 = vmatpush.msra.mxu0 0.0
    %1007 = vmatpush.msra.mxu0 0.0
    %1008 = vmatpush.msra.mxu0 0.0
    %1009 = vmatpush.msra.mxu0 0.0
    %1010 = vmatpush.msra.mxu0 0.0
    %1011 = vmatpush.msra.mxu0 0.0
    %1012 = vmatpush.msra.mxu0 %v230
    %1013 = vmatpush.msra.mxu0 %v228
    %1014 = vmatpush.msra.mxu0 %v226
    %1015 = vmatpush.msra.mxu0 %v224
    %1016 = vmatpush.msra.mxu0 %v222
    %1017 = vmatpush.msra.mxu0 %v220
    %1018 = vmatpush.msra.mxu0 %v218
    %1019 = vmatpush.msra.mxu0 %v216
    %1020 = vmatmul.f32.gmra.mxu0 %v982
    %v1021 = vpop.f32.mrf.mxu0
    %v1022 = vadd.f32 %v978, %v1021
    %1023 = vdwg.mxu0
    %v1024 = vxor.u32 %v1002, 2147483648
    %v1025 = vxor.u32 %v1022, 2147483648
    %v1026 = vmul.f32 %v1024, 1.442695
    %v1027 = vpow.pop %v1026
    %v1028 = vmul.f32 %v1025, 1.442695
    %v1029 = vpow.pop %v1028
    %v1030 = vadd.f32 %v1027, 1.0
    %v1031 = vadd.f32 %v1029, 1.0
    %v1032 = vrcp.pop %v1030
    %v1033 = vmul.f32 %v1030, %v1032
    %v1034 = vsub.f32 1.0, %v1033
    %v1035 = vmul.f32 %v1032, %v1034
    %v1036 = vadd.f32 %v1032, %v1035
    %vm1037 = vweird.f32 %v1030
    %vm1038 = vweird.f32 %v1032
    %vm1039 = vmor %vm1037, %vm1038
    %v1040 = vsel %vm1039, %v1032, %v1036
    %v1041 = vand.u32 2147483647, %v1030
    %vm1042 = vcmp.eq.f32.partialorder %v1041, 8.507059e+37
    %v1043 = vand.u32 %v1030, 2147483648
    %v1044 = vor.u32 1.1754944e-38, %v1043
    %v1045 = vsel %vm1042, %v1044, %v1040
    %v1046 = vmul.f32 1.0, %v1045
    %v1047 = vrcp.pop %v1031
    %v1048 = vmul.f32 %v1031, %v1047
    %v1049 = vsub.f32 1.0, %v1048
    %v1050 = vmul.f32 %v1047, %v1049
    %v1051 = vadd.f32 %v1047, %v1050
    %vm1052 = vweird.f32 %v1031
    %vm1053 = vweird.f32 %v1047
    %vm1054 = vmor %vm1052, %vm1053
    %v1055 = vsel %vm1054, %v1047, %v1051
    %v1056 = vand.u32 2147483647, %v1031
    %vm1057 = vcmp.eq.f32.partialorder %v1056, 8.507059e+37
    %v1058 = vand.u32 %v1031, 2147483648
    %v1059 = vor.u32 1.1754944e-38, %v1058
    %v1060 = vsel %vm1057, %v1059, %v1055
    %v1061 = vmul.f32 1.0, %v1060
    %v1062 = vtanh.pop %v1022
    %v1063 = vmul.f32 %v1046, %v966
    %1065 = vrot.lane.b32.xlu0 %v1062, 64
    %v1066 = vpop.permute.xlu0 %1065
    %v1068 = vmul.f32 %v1046, %v1066
    %1070 = vrot.lane.b32.xlu0 %v1068, 64
    %v1071 = vpop.permute.xlu0 %1070
    %v1073 = vadd.f32 %v1063, %v1071
    %v1074 = vtanh.pop %v1073
    %1076 = vrot.lane.b32.xlu0 %v1074, 64
    %v1077 = vpop.permute.xlu0 %1076
    %v1079 = vmul.f32 %v1061, %v1077
    %v1080 = vld [vmem:[#allocation8] sm:$0xff]
    %v1081 = vld [vmem:[#allocation8 + $0x8] sm:$0xff]
    %v1082 = vld [vmem:[#allocation8 + $0x10] sm:$0xff]
    %v1083 = vld [vmem:[#allocation8 + $0x18] sm:$0xff]
    %v1084 = vld [vmem:[#allocation8 + $0x20] sm:$0xff]
    %v1085 = vld [vmem:[#allocation8 + $0x28] sm:$0xff]
    %v1086 = vld [vmem:[#allocation8 + $0x30] sm:$0xff]
    %v1087 = vld [vmem:[#allocation8 + $0x38] sm:$0xff]
    %v1088 = vld [vmem:[%s7] sm:$0x1]
    %v1090 = vperm.slane %v1088, 0
    %v1093 = vsel %vm233, %v1079, 0
    %1095 = vmatpush.msra.mxu0 0.0
    %1096 = vmatpush.msra.mxu0 0.0
    %1097 = vmatpush.msra.mxu0 0.0
    %1098 = vmatpush.msra.mxu0 0.0
    %1099 = vmatpush.msra.mxu0 0.0
    %1100 = vmatpush.msra.mxu0 0.0
    %1101 = vmatpush.msra.mxu0 0.0
    %1102 = vmatpush.msra.mxu0 0.0
    %1103 = vmatpush.msra.mxu0 %v1087
    %1104 = vmatpush.msra.mxu0 %v1086
    %1105 = vmatpush.msra.mxu0 %v1085
    %1106 = vmatpush.msra.mxu0 %v1084
    %1107 = vmatpush.msra.mxu0 %v1083
    %1108 = vmatpush.msra.mxu0 %v1082
    %1109 = vmatpush.msra.mxu0 %v1081
    %1110 = vmatpush.msra.mxu0 %v1080
    %1111 = vmatmul.f32.gmra.mxu0 %v1093
    %v1112 = vpop.f32.mrf.mxu0
    %v1113 = vadd.f32 %v1090, %v1112
    %1114 = vdwg.mxu0
    %v1115 = vmax.f32 %v1113, 0.0
    %vm1116 = vcmask 254976
    %1117 = vst.msk [vmem:[#allocation9] sm:$0x3] %vm1116, %v1115
    // Predicated region
    $region46: #{_lambda_.1} parent=1 // pred_check
      _
    $region47: #{_lambda_.1} parent=1 // pred_check_branch
      %1119 = sbr.rel (0) target = $region49
    $region48: #{_lambda_.1} parent=1 // pred_region
      %1121 = vsyncadd [#allocation5], 0
      %s1123 = sshll.u32 [#allocation9], 4
      %s1124 = int_to_ptr.vmem [resolvable:$true] %s1123
      %s1125 = sshll.u32 %s8, 4
      %s1126 = int_to_ptr.hbm [resolvable:$true] %s1125
      %1128 = dma.vmem_to_hbm [thread:$0]  %s1124, 32, %s1126, [#allocation5]
    $region49: #{_lambda_.1} parent=1 // pred_fallthru
      _
    // Predicated region
    $region50: #{_lambda_.1} parent=1 // pred_check
      _
    $region51: #{_lambda_.1} parent=1 // pred_check_branch
      %1130 = sbr.rel (0) target = $region53
    $region52: #{_lambda_.1} parent=1 // pred_region
      %1132 = dma.done [#allocation5], 32
    $region53: #{_lambda_.1} parent=1 // pred_fallthru
      _
    %1133 = vsyncpa [#allocation4], 1
    %1134 = vsyncpa [#allocation7], 1
    %1135 = vsyncpa [#allocation5], 1

</llo_original>
